<compile_context>
chip_gen: v6e
topology: v6e:2x2x1
jax: 0.10.0
libtpu: 0.0.40
codegen_flags: <defaults>
</compile_context>

<pallas_src>
import functools
import math

import numpy as np
import jax
import jax.numpy as jnp
from jax import lax
from jax.experimental import pallas as pl
from jax.experimental.pallas import tpu as pltpu

NEG_INF = float("-inf")
B_BLK = 8  # batch samples per block (sublane axis)
# Rescued value of log(exp(a)-exp(b)) when a ~= b (matches espnet's log_substraction_exp).
_LSUB_BAD = -2000.0 + math.log(1.0 - math.exp(-1.0))


# ----------------------------- kernel helpers -----------------------------
def _lse3(a, b, c):
    """logaddexp of three tiles (2 exp + 1 log; the max term is factored out), -inf safe."""
    m_ab = jnp.maximum(a, b)
    hi = jnp.maximum(m_ab, c)
    x1 = jnp.minimum(a, b)
    x2 = jnp.where(c >= m_ab, m_ab, c)
    hi_safe = jnp.where(hi == NEG_INF, 0.0, hi)
    s = jnp.exp(x1 - hi_safe) + jnp.exp(x2 - hi_safe)
    return jnp.where(hi == NEG_INF, NEG_INF, hi_safe + jnp.log(1.0 + s))


def _log_sub_exp(a, b):
    """log(exp(a) - exp(b)) with the same degenerate handling as the PyTorch
    log_substraction_exp (a ~= b collapses to ~-2000.46).  Written in the a-anchored form
    (exp never overflows in f32) and the rescue folded into a compile-time constant, so it
    costs only 1 exp + 1 log per call."""
    a_ninf = a == NEG_INF
    b_ninf = b == NEG_INF
    both = jnp.logical_and(~a_ninf, ~b_ninf)
    a_ = jnp.where(both, a, -1.0)
    b_ = jnp.where(both, b, -2.0)
    tmp = a_ + jnp.log(1.0 - jnp.exp(b_ - a_))
    bad = jnp.logical_or(jnp.isinf(tmp), jnp.isnan(tmp))
    tmp = jnp.where(bad, _LSUB_BAD, tmp)
    ans = jnp.where(both, tmp, NEG_INF)
    return jnp.where(jnp.logical_and(~a_ninf, b_ninf), a, ans)


# --------------------------------- kernels ---------------------------------
def _brctc_backward_kernel(hmax_ref, emit_ref, term_ref, skipout_ref, hlenm1_ref,
                           bp_ref, gcur_s, *, tc, s_pad):
    """Pass 1: CTC backward recursion over one *reversed* time chunk.

    Layout: states -> lanes, batch -> sublanes.  gcur = beta[t+1] + emit[t+1] is carried
    across chunks in VMEM scratch and in vregs (fori carry) within the chunk.  The chunk
    of beta'[t] = log(exp(beta[t]) - exp(beta[t+1]+emit[t+1])) is written as a pipelined
    HBM output (the forward pass streams it back in).
    """
    b = pl.program_id(0)
    k = pl.program_id(1)
    n_tc = pl.num_programs(1)
    hmax = hmax_ref[b]
    cs = (n_tc - 1 - k) * tc                    # global start time of this chunk

    @pl.when(k == 0)
    def _init():
        gcur_s[...] = jnp.full(gcur_s.shape, NEG_INF, jnp.float32)

    @pl.when(cs < hmax)
    def _run():
        n_steps = jnp.minimum(tc, hmax - cs)
        term = term_ref[...]
        skip_out = skipout_ref[...]
        hlen_m1 = hlenm1_ref[...]
        lane = lax.broadcasted_iota(jnp.int32, term.shape, 1)
        edge1 = jnp.where(lane == s_pad - 1, NEG_INF, 0.0).astype(jnp.float32)

        def body(i, gcur):
            t_loc = n_steps - 1 - i
            g1 = pltpu.roll(gcur, s_pad - 1, axis=1) + edge1      # beta+emit at s+1
            g2 = pltpu.roll(gcur, s_pad - 2, axis=1) + skip_out   # beta+emit at s+2
            rec = _lse3(gcur, g1, g2)
            bt = jnp.where((cs + t_loc) == hlen_m1, term, rec)    # per-lane terminal frame
            bp_ref[t_loc] = _log_sub_exp(bt, gcur).astype(bp_ref.dtype)
            return bt + emit_ref[t_loc]

        gcur_s[...] = lax.fori_loop(0, n_steps, body, gcur_s[...])


def _brctc_forward_kernel(hmax_ref, emit_ref, bp_ref, skipin_ref, rstep_ref,
                          out_ref, alpha_s, m_s, sum_s, *, tc, group_strategy, u_max):
    """Pass 2: CTC forward recursion + exponential-risk + online LSE over time, then the
    'end' / 'end_mean' group reduction.  alpha / m / sum are carried in vregs within each
    chunk and persist across chunks in VMEM scratch."""
    b = pl.program_id(0)
    k = pl.program_id(1)
    hmax = hmax_ref[b]
    cs = k * tc

    @pl.when(k == 0)
    def _init():
        lane = lax.broadcasted_iota(jnp.int32, alpha_s.shape, 1)
        # virtual alpha[-1]: prob 1 at state 0 makes the t=0 step fall out of the
        # generic recursion (alpha[0] = emit[0] at states {0,1}).
        alpha_s[...] = jnp.where(lane == 0, 0.0, NEG_INF).astype(jnp.float32)
        m_s[...] = jnp.full(m_s.shape, NEG_INF, jnp.float32)
        sum_s[...] = jnp.zeros(sum_s.shape, jnp.float32)

    @pl.when(cs < hmax)
    def _run():
        n_steps = jnp.minimum(tc, hmax - cs)
        skip_in = skipin_ref[...]
        rstep = rstep_ref[...]

        def body(i, carry):
            a_prev, m, ssum = carry
            e_t = emit_ref[i]
            a1 = pltpu.roll(a_prev, 1, axis=1)                 # alpha at s-1
            a2 = pltpu.roll(a_prev, 2, axis=1) + skip_in       # alpha at s-2 (if allowed)
            alpha = e_t + _lse3(a_prev, a1, a2)
            risk = (cs + i + 1).astype(jnp.float32) * rstep    # (t+1)/hlen * risk_factor
            ls = alpha + bp_ref[i].astype(jnp.float32) - risk
            m_new = jnp.maximum(m, ls)                         # online logsumexp over time
            m_safe = jnp.where(m_new == NEG_INF, 0.0, m_new)
            ssum = ssum * jnp.exp(m - m_safe) + jnp.exp(ls - m_safe)
            return alpha, m_new, ssum

        a0, m0, s0 = lax.fori_loop(0, n_steps, body,
                                   (alpha_s[...], m_s[...], sum_s[...]))
        alpha_s[...] = a0
        m_s[...] = m0
        sum_s[...] = s0

    @pl.when(k == pl.num_programs(1) - 1)
    def _finalize():
        m = m_s[...]
        loss_u = jnp.where(m == NEG_INF, NEG_INF, m + jnp.log(sum_s[...]))
        s_iota = lax.broadcasted_iota(jnp.int32, loss_u.shape, 1)
        is_label = (s_iota % 2) == 1
        valid = jnp.logical_and(is_label, loss_u > NEG_INF)
        cnt = jnp.sum(valid.astype(jnp.int32), axis=1, keepdims=True)       # (B_BLK, 1)
        if group_strategy == "end":
            # cnt == 0 is degenerate; mimic the reference (picks the last label row).
            sel = jnp.where(cnt > 0, 2 * cnt - 1, 2 * u_max - 1)
            loss = -jnp.sum(jnp.where(s_iota == sel, loss_u, 0.0),
                            axis=1, keepdims=True)
        else:  # "end_mean"
            loss = -(jnp.sum(jnp.where(valid, loss_u, 0.0), axis=1, keepdims=True)
                     / jnp.maximum(cnt, 1).astype(jnp.float32))
        out_ref[...] = jnp.broadcast_to(loss, out_ref.shape)


# ------------------------------- host wrapper ------------------------------
def _find_minimum_hlens(ys_list):
    mins = []
    for y in ys_list:
        m, prev = 0, None
        for lab in y:
            m += 1
            if lab == prev:
                m += 1
            prev = lab
        mins.append(m)
    return mins


def bayes_risk_ctc_loss(nnet_output, ys_pad, hlens, ylens,
                        risk_strategy="exp", group_strategy="end",
                        risk_factor=0.0, time_chunk=128,
                        trellis_dtype=jnp.float32):
    """Equivalent of BayesRiskCTC.forward (per-utterance losses, float32).

    nnet_output: (B, T, V) CTC log-probabilities (blank id = 0).
    ys_pad / hlens / ylens: host metadata (the PyTorch module also walks them on the host
    for find_minimum_hlens / k2 graph construction).
    trellis_dtype: dtype of the beta' trellis streamed between the two passes
    (jnp.bfloat16 halves the inter-pass HBM traffic at a small accuracy cost).
    """
    if risk_strategy != "exp":
        # TODO(synk): risk_strategy='exp_rel' needs a per-row argmax over time; not implemented.
        raise NotImplementedError("only risk_strategy='exp' is implemented")
    if group_strategy not in ("end", "end_mean"):
        raise NotImplementedError

    nnet_output = jnp.asarray(nnet_output, jnp.float32)
    ys_np = np.asarray(ys_pad)
    B, T, _ = nnet_output.shape
    hlens_np = np.minimum(np.asarray(hlens).astype(np.int64), T)
    ylens_np = np.asarray(ylens).astype(np.int64)

    ys_list = [list(map(int, ys_np[b, : int(ylens_np[b])])) for b in range(B)]
    min_hlens = np.array(_find_minimum_hlens(ys_list), np.int64)
    valid_idx = np.nonzero(min_hlens <= hlens_np)[0]
    if len(valid_idx) < 1:
        return jnp.asarray([0.0], jnp.float32)

    U = int(ylens_np.max())
    S = 2 * U + 1
    S_pad = max(128, ((S + 127) // 128) * 128)        # states  -> lane axis (128-multiple)
    B_pad = ((B + B_BLK - 1) // B_BLK) * B_BLK        # batch   -> sublane axis (8-blocks)
    nb_b = B_pad // B_BLK
    hmax_global = max(1, int(hlens_np.max()))

    # ---- time chunking: VMEM is O(chunk); cap the chunk from physical VMEM ----
    trellis_bytes = jnp.dtype(trellis_dtype).itemsize
    try:
        vmem_cap = int(pltpu.get_tpu_info().vmem_capacity_bytes)
    except Exception:
        vmem_cap = 64 * 2 ** 20
    per_step = B_BLK * S_pad * 2 * (4 + trellis_bytes)    # double-buffered emit + beta' per t
    tc_cap = max(8, vmem_cap // (4 * per_step))
    tc = int(max(1, min(int(time_chunk), hmax_global, tc_cap)))
    n_tc = -(-hmax_global // tc)
    t_pad = n_tc * tc

    # ---- per-sample tables (host side, as in the PyTorch module) ----
    hlen_pad = np.ones(B_pad, np.int64)
    hlen_pad[:B] = hlens_np
    ns_pad = np.ones(B_pad, np.int64)
    ns_pad[:B] = 2 * ylens_np + 1

    labels = np.zeros((B, S_pad), np.int32)                   # extended label seq (blank = 0)
    skip_in = np.full((B_pad, S_pad), NEG_INF, np.float32)    # additive mask: s-2 -> s
    skip_out = np.full((B_pad, S_pad), NEG_INF, np.float32)   # additive mask: s -> s+2
    term = np.full((B_pad, S_pad), NEG_INF, np.float32)       # beta terminal column
    for b in range(B):
        y = ys_list[b]
        for i, lab in enumerate(y):
            labels[b, 2 * i + 1] = lab
        for i in range(1, len(y)):
            if y[i] != y[i - 1]:
                s = 2 * i + 1
                skip_in[b, s] = 0.0
                skip_out[b, s - 2] = 0.0
    for b in range(B_pad):
        ns = int(ns_pad[b])
        term[b, ns - 1] = 0.0
        if ns >= 2:
            term[b, ns - 2] = 0.0

    hlen_m1 = np.repeat((hlen_pad - 1).astype(np.int32)[:, None], S_pad, axis=1)
    rstep = np.repeat(
        (float(risk_factor) / hlen_pad.astype(np.float64)).astype(np.float32)[:, None],
        S_pad, axis=1)
    hmax_blocks = hlen_pad.reshape(nb_b, B_BLK).max(axis=1).astype(np.int32)

    # ---- emission gather (plain index-select; the vocabulary never enters the kernel):
    # emit[t, b, s] = nnet_output[b, t, labels[b, s]], -inf outside the per-sample
    # (hlen, num_states) window; padded to (t_pad, B_pad, S_pad), lane-dense in states. ----
    t_used = hmax_global
    lab_j = jnp.asarray(labels)                                        # (B, S_pad)
    emit = jnp.take_along_axis(nnet_output[:, :t_used, :],
                               lab_j[:, None, :], axis=2)              # (B, t_used, S_pad)
    t_i = jnp.arange(t_used, dtype=jnp.int32)[None, :, None]
    s_i = jnp.arange(S_pad, dtype=jnp.int32)[None, None, :]
    hl_j = jnp.asarray(hlens_np.astype(np.int32))[:, None, None]
    ns_j = jnp.asarray((2 * ylens_np + 1).astype(np.int32))[:, None, None]
    emit = jnp.where((t_i < hl_j) & (s_i < ns_j), emit, NEG_INF)
    emit = jnp.transpose(emit, (1, 0, 2))                              # (t_used, B, S_pad)
    emit = jnp.pad(emit, ((0, t_pad - t_used), (0, B_pad - B), (0, 0)),
                   constant_values=NEG_INF)

    # explicit scoped-VMEM budget derived from the actual block sizes
    emit_chunk = tc * B_BLK * S_pad * 4
    bp_chunk = tc * B_BLK * S_pad * trellis_bytes
    aux = B_BLK * S_pad * 4
    need = 2 * (emit_chunk + bp_chunk) + 16 * aux + 2 * B_BLK * 128 * 4
    vmem_limit = int(min(vmem_cap - (2 << 20), max(need + (4 << 20), 16 << 20)))
    cparams = pltpu.CompilerParams(
        dimension_semantics=("parallel", "arbitrary"),
        vmem_limit_bytes=vmem_limit)

    hmax_j = jnp.asarray(hmax_blocks)
    term_j = jnp.asarray(term)
    skip_in_j = jnp.asarray(skip_in)
    skip_out_j = jnp.asarray(skip_out)
    hlen_m1_j = jnp.asarray(hlen_m1)
    rstep_j = jnp.asarray(rstep)

    def row_spec():
        return pl.BlockSpec((B_BLK, S_pad), lambda b, k, hm: (b, 0))

    # -------- pass 1: backward recursion over reversed time chunks, writes beta' --------
    bwd = functools.partial(_brctc_backward_kernel, tc=tc, s_pad=S_pad)
    rev_chunk_spec = pl.BlockSpec((tc, B_BLK, S_pad),
                                  lambda b, k, hm: (n_tc - 1 - k, b, 0))
    beta_prime = pl.pallas_call(
        bwd,
        out_shape=jax.ShapeDtypeStruct((t_pad, B_pad, S_pad), trellis_dtype),
        grid_spec=pltpu.PrefetchScalarGridSpec(
            num_scalar_prefetch=1,
            grid=(nb_b, n_tc),
            in_specs=[rev_chunk_spec, row_spec(), row_spec(), row_spec()],
            out_specs=rev_chunk_spec,
            scratch_shapes=[pltpu.VMEM((B_BLK, S_pad), jnp.float32)]),
        compiler_params=cparams,
    )(hmax_j, emit, term_j, skip_out_j, hlen_m1_j)

    # -------- pass 2: forward recursion + risk + online LSE + group reduction --------
    fwd = functools.partial(_brctc_forward_kernel, tc=tc,
                            group_strategy=group_strategy, u_max=U)
    fwd_chunk_spec = pl.BlockSpec((tc, B_BLK, S_pad), lambda b, k, hm: (k, b, 0))
    out = pl.pallas_call(
        fwd,
        out_shape=jax.ShapeDtypeStruct((B_pad, 128), jnp.float32),
        grid_spec=pltpu.PrefetchScalarGridSpec(
            num_scalar_prefetch=1,
            grid=(nb_b, n_tc),
            in_specs=[fwd_chunk_spec,
                      pl.BlockSpec((tc, B_BLK, S_pad), lambda b, k, hm: (k, b, 0)),
                      row_spec(), row_spec()],
            out_specs=pl.BlockSpec((B_BLK, 128), lambda b, k, hm: (b, 0)),
            scratch_shapes=[pltpu.VMEM((B_BLK, S_pad), jnp.float32),
                            pltpu.VMEM((B_BLK, S_pad), jnp.float32),
                            pltpu.VMEM((B_BLK, S_pad), jnp.float32)]),
        compiler_params=cparams,
    )(hmax_j, emit, beta_prime, skip_in_j, rstep_j)

    loss_all = out[:B, 0]
    return loss_all[jnp.asarray(valid_idx)]


# --------------------------- numpy reference (f64) --------------------------
def _np_logsub(a, b):
    with np.errstate(divide="ignore", invalid="ignore", over="ignore"):
        ans = np.full_like(a, -np.inf)
        mask1 = (~np.isinf(a)) & (~np.isinf(b))
        a_ = np.where(mask1, a, -1.0)
        b_ = np.where(mask1, b, -2.0)
        ans_tmp = b_ + np.log(np.exp(a_ - b_) - 1.0)
        bad = np.isinf(ans_tmp) | np.isnan(ans_tmp)
        a_ = np.where(bad, -2000.0, a_)
        b_ = np.where(bad, -2001.0, b_)
        ans1 = b_ + np.log(np.exp(a_ - b_) - 1.0)
        ans = np.where(mask1, ans1, ans)
        ans = np.where((~np.isinf(a)) & np.isinf(b), a, ans)
    return ans


def _np_lse(v):
    v = np.asarray(v, np.float64)
    m = np.max(v)
    if np.isneginf(m):
        return -np.inf
    return m + np.log(np.sum(np.exp(v - m)))


def _reference_brctc(nnet_output, ys_pad, hlens, ylens, risk_factor=0.0,
                     group_strategy="end"):
    logp = np.asarray(nnet_output, np.float64)
    B, T, _ = logp.shape
    out = np.zeros(B, np.float64)
    for b in range(B):
        hl, yl = int(hlens[b]), int(ylens[b])
        y = [int(v) for v in np.asarray(ys_pad)[b, :yl]]
        S = 2 * yl + 1
        lab = np.zeros(S, np.int64)
        lab[1::2] = y
        emit = np.full((S, T), -np.inf)
        for s in range(S):
            emit[s, :hl] = logp[b, :hl, lab[s]]
        alpha = np.full((S, T), -np.inf)
        beta = np.full((S, T), -np.inf)
        alpha[0, 0] = emit[0, 0]
        if S > 1:
            alpha[1, 0] = emit[1, 0]
        for t in range(1, T):
            for s in range(S):
                cand = [alpha[s, t - 1]]
                if s >= 1:
                    cand.append(alpha[s - 1, t - 1])
                if s >= 2 and s % 2 == 1 and lab[s] != lab[s - 2]:
                    cand.append(alpha[s - 2, t - 1])
                alpha[s, t] = emit[s, t] + _np_lse(cand)
        beta[S - 1, hl - 1] = 0.0
        if S >= 2:
            beta[S - 2, hl - 1] = 0.0
        for t in range(hl - 2, -1, -1):
            for s in range(S):
                cand = [beta[s, t + 1] + emit[s, t + 1]]
                if s + 1 < S:
                    cand.append(beta[s + 1, t + 1] + emit[s + 1, t + 1])
                if s + 2 < S and (s + 2) % 2 == 1 and lab[s + 2] != lab[s]:
                    cand.append(beta[s + 2, t + 1] + emit[s + 2, t + 1])
                beta[s, t] = _np_lse(cand)
        p = np.where(np.isinf(alpha), -np.inf, emit)
        bp = _np_logsub(beta[:, :-1], beta[:, 1:] + p[:, 1:])
        beta_prime = np.concatenate([bp, beta[:, -1:]], axis=1)
        loss_state = alpha + beta_prime
        risk = (np.arange(1, T + 1, dtype=np.float64)[None, :] / hl) * risk_factor
        loss_state = loss_state - risk
        loss_u = np.array([_np_lse(loss_state[s]) for s in range(S)])
        lu = loss_u[1::2]
        mask = ~np.isinf(lu)
        cnt = int(mask.sum())
        if group_strategy == "end":
            out[b] = -lu[cnt - 1]
        else:
            out[b] = -(np.where(mask, lu, 0.0).sum() / cnt)
    return out


# ----------------------------------- main -----------------------------------
if __name__ == "__main__":
    key = jax.random.PRNGKey(0)
    B, T, V = 3, 16, 8
    logits = jax.random.normal(key, (B, T, V), jnp.float32)
    nnet_output = jax.nn.log_softmax(logits, axis=-1)        # CTC log-probs, blank = 0

    ys_pad = np.array([[1, 2, 3], [4, 5, 0], [2, 2, 5]], np.int32)
    ylens = np.array([3, 2, 3], np.int32)
    hlens = np.array([16, 11, 9], np.int32)
    risk_factor = 0.1

    for gs in ("end", "end_mean"):
        loss = bayes_risk_ctc_loss(nnet_output, ys_pad, hlens, ylens,
                                   risk_strategy="exp", group_strategy=gs,
                                   risk_factor=risk_factor,
                                   time_chunk=8)              # exercise multi-chunk pipeline
        loss = np.asarray(jax.block_until_ready(loss))
        ref = _reference_brctc(np.asarray(nnet_output, np.float64), ys_pad, hlens,
                               ylens, risk_factor=risk_factor, group_strategy=gs)
        assert np.allclose(loss, ref, rtol=5e-3, atol=5e-2), (gs, loss, ref)

    print("KERNEL_OK")
</pallas_src>

<mosaic_0001>
module attributes {stable_mosaic.version = 11 : i64} {
  func.func @_brctc_backward_kernel(%arg0: i32, %arg1: i32, %arg2: memref<1xi32, #tpu.memory_space<smem>>, %arg3: memref<8x8x128xf32, #tpu.memory_space<vmem>>, %arg4: memref<8x128xf32, #tpu.memory_space<vmem>>, %arg5: memref<8x128xf32, #tpu.memory_space<vmem>>, %arg6: memref<8x128xi32, #tpu.memory_space<vmem>>, %arg7: memref<8x8x128xf32, #tpu.memory_space<vmem>>, %arg8: memref<8x128xf32, #tpu.memory_space<vmem>>) attributes {dimension_semantics = [#tpu.dimension_semantics<parallel>, #tpu.dimension_semantics<arbitrary>], iteration_bounds = array<i64: 1, 2>, scalar_prefetch = 1 : i64, scratch_operands = 1 : i64, tpu.core_type = #tpu.core_type<tc>, window_params = [{transform_indices = @transform_0, window_bounds = array<i64: 8, 8, 128>}, {transform_indices = @transform_1, window_bounds = array<i64: 8, 128>}, {transform_indices = @transform_2, window_bounds = array<i64: 8, 128>}, {transform_indices = @transform_3, window_bounds = array<i64: 8, 128>}, {transform_indices = @transform_4, window_bounds = array<i64: 8, 8, 128>}]} {
    %0 = arith.index_cast %arg0 : i32 to index
    %1 = memref.load %arg2[%0] : memref<1xi32, #tpu.memory_space<smem>>
    %c1_i32 = arith.constant 1 : i32
    %2 = arith.subi %c1_i32, %arg1 : i32
    %c8_i32 = arith.constant 8 : i32
    %3 = arith.muli %2, %c8_i32 : i32
    %c0_i32 = arith.constant 0 : i32
    %4 = arith.cmpi eq, %arg1, %c0_i32 : i32
    %5 = arith.extui %4 : i1 to i32
    %c0_i32_0 = arith.constant 0 : i32
    %6 = arith.cmpi ne, %5, %c0_i32_0 : i32
    scf.if %6 {
      %cst = arith.constant 0xFF800000 : f32
      %10 = vector.broadcast %cst : f32 to vector<8x128xf32>
      %c0 = arith.constant 0 : index
      %c0_2 = arith.constant 0 : index
      %11 = vector.load %arg8[%c0, %c0_2] : memref<8x128xf32, #tpu.memory_space<vmem>>, vector<8x128xf32>
      tpu.vector_store %arg8[%c0, %c0_2], %10 {strides = array<i32>} : memref<8x128xf32, #tpu.memory_space<vmem>>, vector<8x128xf32>,
    } else {
    }
    %7 = arith.cmpi slt, %3, %1 : i32
    %8 = arith.extui %7 : i1 to i32
    %c0_i32_1 = arith.constant 0 : i32
    %9 = arith.cmpi ne, %8, %c0_i32_1 : i32
    scf.if %9 {
      %10 = arith.subi %1, %3 : i32
      %c8_i32_2 = arith.constant 8 : i32
      %11 = arith.minsi %c8_i32_2, %10 : i32
      %c0 = arith.constant 0 : index
      %c0_3 = arith.constant 0 : index
      %12 = vector.load %arg4[%c0, %c0_3] : memref<8x128xf32, #tpu.memory_space<vmem>>, vector<8x128xf32>
      %c0_4 = arith.constant 0 : index
      %c0_5 = arith.constant 0 : index
      %13 = vector.load %arg5[%c0_4, %c0_5] : memref<8x128xf32, #tpu.memory_space<vmem>>, vector<8x128xf32>
      %c0_6 = arith.constant 0 : index
      %c0_7 = arith.constant 0 : index
      %14 = vector.load %arg6[%c0_6, %c0_7] : memref<8x128xi32, #tpu.memory_space<vmem>>, vector<8x128xi32>
      %15 = tpu.iota {dimensions = array<i32: 1>} : vector<8x128xi32>
      %c127_i32 = arith.constant 127 : i32
      %16 = vector.broadcast %c127_i32 : i32 to vector<8x128xi32>
      %17 = arith.cmpi eq, %15, %16 : vector<8x128xi32>
      %cst = arith.constant 0xFF800000 : f32
      %cst_8 = arith.constant 0.000000e+00 : f32
      %18 = vector.broadcast %cst : f32 to vector<8x128xf32>
      %19 = vector.broadcast %cst_8 : f32 to vector<8x128xf32>
      %20 = arith.select %17, %18, %19 : vector<8x128xi1>, vector<8x128xf32>
      %c0_9 = arith.constant 0 : index
      %c0_10 = arith.constant 0 : index
      %21 = vector.load %arg8[%c0_9, %c0_10] : memref<8x128xf32, #tpu.memory_space<vmem>>, vector<8x128xf32>
      %c0_i32_11 = arith.constant 0 : i32
      %22 = arith.subi %11, %c0_i32_11 : i32
      %23 = arith.addi %c0_i32_11, %22 : i32
      %c1_i32_12 = arith.constant 1 : i32
      %24 = scf.for %arg9 = %c0_i32_11 to %23 step %c1_i32_12 iter_args(%arg10 = %21) -> (vector<8x128xf32>)  : i32 {
        %c1_i32_15 = arith.constant 1 : i32
        %26 = arith.subi %11, %c1_i32_15 : i32
        %27 = arith.subi %26, %arg9 : i32
        %c127_i32_16 = arith.constant 127 : i32
        %28 = tpu.dynamic_rotate %arg10 by %c127_i32_16 dim 1 : vector<8x128xf32>, i32 -> vector<8x128xf32>
        %29 = arith.addf %28, %20 : vector<8x128xf32>
        %c126_i32 = arith.constant 126 : i32
        %30 = tpu.dynamic_rotate %arg10 by %c126_i32 dim 1 : vector<8x128xf32>, i32 -> vector<8x128xf32>
        %31 = arith.addf %30, %13 : vector<8x128xf32>
        %32 = arith.maximumf %arg10, %29 : vector<8x128xf32>
        %33 = arith.maximumf %32, %31 : vector<8x128xf32>
        %34 = arith.minimumf %arg10, %29 : vector<8x128xf32>
        %35 = arith.cmpf oge, %31, %32 : vector<8x128xf32>
        %36 = arith.select %35, %32, %31 : vector<8x128xi1>, vector<8x128xf32>
        %cst_17 = arith.constant 0xFF800000 : f32
        %37 = vector.broadcast %cst_17 : f32 to vector<8x128xf32>
        %38 = arith.cmpf oeq, %33, %37 : vector<8x128xf32>
        %cst_18 = arith.constant 0.000000e+00 : f32
        %39 = vector.broadcast %cst_18 : f32 to vector<8x128xf32>
        %40 = arith.select %38, %39, %33 : vector<8x128xi1>, vector<8x128xf32>
        %41 = arith.subf %34, %40 : vector<8x128xf32>
        %42 = math.exp %41 : vector<8x128xf32>
        %43 = arith.subf %36, %40 : vector<8x128xf32>
        %44 = math.exp %43 : vector<8x128xf32>
        %45 = arith.addf %42, %44 : vector<8x128xf32>
        %cst_19 = arith.constant 0xFF800000 : f32
        %46 = vector.broadcast %cst_19 : f32 to vector<8x128xf32>
        %47 = arith.cmpf oeq, %33, %46 : vector<8x128xf32>
        %cst_20 = arith.constant 1.000000e+00 : f32
        %48 = vector.broadcast %cst_20 : f32 to vector<8x128xf32>
        %49 = arith.addf %48, %45 : vector<8x128xf32>
        %50 = math.log %49 : vector<8x128xf32>
        %51 = arith.addf %40, %50 : vector<8x128xf32>
        %cst_21 = arith.constant 0xFF800000 : f32
        %52 = vector.broadcast %cst_21 : f32 to vector<8x128xf32>
        %53 = arith.select %47, %52, %51 : vector<8x128xi1>, vector<8x128xf32>
        %54 = arith.addi %3, %27 : i32
        %55 = vector.broadcast %54 : i32 to vector<8x128xi32>
        %56 = arith.cmpi eq, %55, %14 : vector<8x128xi32>
        %57 = arith.select %56, %12, %53 : vector<8x128xi1>, vector<8x128xf32>
        %cst_22 = arith.constant 0xFF800000 : f32
        %58 = vector.broadcast %cst_22 : f32 to vector<8x128xf32>
        %59 = arith.cmpf oeq, %57, %58 : vector<8x128xf32>
        %cst_23 = arith.constant 0xFF800000 : f32
        %60 = vector.broadcast %cst_23 : f32 to vector<8x128xf32>
        %61 = arith.cmpf oeq, %arg10, %60 : vector<8x128xf32>
        %cst_24 = arith.constant dense<true> : vector<8x128xi1>
        %62 = arith.xori %59, %cst_24 : vector<8x128xi1>
        %cst_25 = arith.constant dense<true> : vector<8x128xi1>
        %63 = arith.xori %61, %cst_25 : vector<8x128xi1>
        %64 = arith.andi %62, %63 : vector<8x128xi1>
        %cst_26 = arith.constant -1.000000e+00 : f32
        %65 = vector.broadcast %cst_26 : f32 to vector<8x128xf32>
        %66 = arith.select %64, %57, %65 : vector<8x128xi1>, vector<8x128xf32>
        %cst_27 = arith.constant -2.000000e+00 : f32
        %67 = vector.broadcast %cst_27 : f32 to vector<8x128xf32>
        %68 = arith.select %64, %arg10, %67 : vector<8x128xi1>, vector<8x128xf32>
        %69 = arith.subf %68, %66 : vector<8x128xf32>
        %70 = math.exp %69 : vector<8x128xf32>
        %cst_28 = arith.constant 1.000000e+00 : f32
        %71 = vector.broadcast %cst_28 : f32 to vector<8x128xf32>
        %72 = arith.subf %71, %70 : vector<8x128xf32>
        %73 = math.log %72 : vector<8x128xf32>
        %74 = arith.addf %66, %73 : vector<8x128xf32>
        %75 = math.absf %74 : vector<8x128xf32>
        %cst_29 = arith.constant 0x7F800000 : f32
        %76 = vector.broadcast %cst_29 : f32 to vector<8x128xf32>
        %77 = arith.cmpf oeq, %75, %76 : vector<8x128xf32>
        %78 = arith.cmpf one, %74, %74 : vector<8x128xf32>
        %79 = arith.ori %77, %78 : vector<8x128xi1>
        %cst_30 = arith.constant -2000.45862 : f32
        %80 = vector.broadcast %cst_30 : f32 to vector<8x128xf32>
        %81 = arith.select %79, %80, %74 : vector<8x128xi1>, vector<8x128xf32>
        %cst_31 = arith.constant 0xFF800000 : f32
        %82 = vector.broadcast %cst_31 : f32 to vector<8x128xf32>
        %83 = arith.select %64, %81, %82 : vector<8x128xi1>, vector<8x128xf32>
        %cst_32 = arith.constant dense<true> : vector<8x128xi1>
        %84 = arith.xori %59, %cst_32 : vector<8x128xi1>
        %85 = arith.andi %84, %61 : vector<8x128xi1>
        %86 = arith.select %85, %57, %83 : vector<8x128xi1>, vector<8x128xf32>
        %87 = arith.index_cast %27 : i32 to index
        %c0_33 = arith.constant 0 : index
        %c0_34 = arith.constant 0 : index
        %88 = vector.load %arg7[%87, %c0_33, %c0_34] : memref<8x8x128xf32, #tpu.memory_space<vmem>>, vector<1x8x128xf32>
        %89 = vector.shape_cast %88 : vector<1x8x128xf32> to vector<8x128xf32>
        %90 = vector.shape_cast %86 : vector<8x128xf32> to vector<1x8x128xf32>
        tpu.vector_store %arg7[%87, %c0_33, %c0_34], %90 {strides = array<i32>} : memref<8x8x128xf32, #tpu.memory_space<vmem>>, vector<1x8x128xf32>,
        %91 = arith.index_cast %27 : i32 to index
        %c0_35 = arith.constant 0 : index
        %c0_36 = arith.constant 0 : index
        %92 = vector.load %arg3[%91, %c0_35, %c0_36] : memref<8x8x128xf32, #tpu.memory_space<vmem>>, vector<1x8x128xf32>
        %93 = vector.shape_cast %92 : vector<1x8x128xf32> to vector<8x128xf32>
        %94 = arith.addf %57, %93 : vector<8x128xf32>
        scf.yield %94 : vector<8x128xf32>
      }
      %c0_13 = arith.constant 0 : index
      %c0_14 = arith.constant 0 : index
      %25 = vector.load %arg8[%c0_13, %c0_14] : memref<8x128xf32, #tpu.memory_space<vmem>>, vector<8x128xf32>
      tpu.vector_store %arg8[%c0_13, %c0_14], %24 {strides = array<i32>} : memref<8x128xf32, #tpu.memory_space<vmem>>, vector<8x128xf32>,
    } else {
    }
    return
  }
  func.func @transform_0(%arg0: i32, %arg1: i32, %arg2: memref<1xi32, #tpu.memory_space<smem>>) -> (i32, i32, i32) {
    %c1_i32 = arith.constant 1 : i32
    %0 = arith.subi %c1_i32, %arg1 : i32
    %c0_i32 = arith.constant 0 : i32
    %c0_i32_0 = arith.constant 0 : i32
    return %0, %arg0, %c0_i32 : i32, i32, i32
  }
  func.func @transform_1(%arg0: i32, %arg1: i32, %arg2: memref<1xi32, #tpu.memory_space<smem>>) -> (i32, i32) {
    %c0_i32 = arith.constant 0 : i32
    %c0_i32_0 = arith.constant 0 : i32
    return %arg0, %c0_i32 : i32, i32
  }
  func.func @transform_2(%arg0: i32, %arg1: i32, %arg2: memref<1xi32, #tpu.memory_space<smem>>) -> (i32, i32) {
    %c0_i32 = arith.constant 0 : i32
    %c0_i32_0 = arith.constant 0 : i32
    return %arg0, %c0_i32 : i32, i32
  }
  func.func @transform_3(%arg0: i32, %arg1: i32, %arg2: memref<1xi32, #tpu.memory_space<smem>>) -> (i32, i32) {
    %c0_i32 = arith.constant 0 : i32
    %c0_i32_0 = arith.constant 0 : i32
    return %arg0, %c0_i32 : i32, i32
  }
  func.func @transform_4(%arg0: i32, %arg1: i32, %arg2: memref<1xi32, #tpu.memory_space<smem>>) -> (i32, i32, i32) {
    %c1_i32 = arith.constant 1 : i32
    %0 = arith.subi %c1_i32, %arg1 : i32
    %c0_i32 = arith.constant 0 : i32
    %c0_i32_0 = arith.constant 0 : i32
    return %0, %arg0, %c0_i32 : i32, i32, i32
  }
}

</mosaic_0001>

<llo_original>
// kernel: tpu_custom_call.1
$region0: #{tpu_custom_call.1}
  #allocation0 [shape = 'u32[]', space=smem, size = 0x4, offset = 0x4, fixed_abs, tag = 'smem constant byte address 0x4 - core index']
  #allocation1 [shape = 'u32[144,128]{1,0:T(1,128)}', space=vmem, size = 0x12000, scoped, tag = 'internal scratch']
  #allocation2 [shape = 'f32[8,128]{1,0:T(8,128)}', space=vmem, size = 0x1000, scoped, tag = 'scratch operand']
  #allocation3 [shape = 's32[1]{0}', space=sflag, size = 0x4, scoped, tag = 'scoped memory for tpu_custom_call.1']
  #allocation4 [shape = 's32[1]{0:T(128)S(6)}', space=smem, size = 0x200, scoped, tag = 'prefetched SMEM operand 0']
  %s0 = inlined_call_operand.<no memory space> [shape: s32[1], index: 0, kind: input, shape index: {}]
  %s1 = inlined_call_operand.hbm [shape: f32[16,8,128], index: 1, kind: input, shape index: {}]
  %s2 = inlined_call_operand.hbm [shape: f32[8,128], index: 2, kind: input, shape index: {}]
  %s3 = inlined_call_operand.hbm [shape: f32[8,128], index: 3, kind: input, shape index: {}]
  %s4 = inlined_call_operand.hbm [shape: s32[8,128], index: 4, kind: input, shape index: {}]
  %s5 = inlined_call_operand.hbm [shape: f32[16,8,128], index: 5, kind: output, shape index: {}]
  %s6 = sld [smem:[#allocation0]]
  $region80: #{tpu_custom_call.1} parent=0
    _
  %s8 = ssub.s32 1, %s6
  %s9 = scalar_select 0, %s8, %s6
  %10 = sst [smem:[#allocation4]] %s0
  $region1: #{tpu_custom_call.1} parent=0
    #allocation5 [shape = 'u8[65536]{0}', space=vmem, size = 0x10000, scoped, tag = 'input window, operand 1']
    #allocation6 [shape = 's32[2]{0}', space=sflag, size = 0x8, scoped, tag = 'scoped memory for tpu_custom_call.1']
    #allocation7 [shape = 's32[2]{0}', space=sflag, size = 0x8, scoped, tag = 'scoped memory for tpu_custom_call.1']
    #allocation8 [shape = 'u8[4096]{0}', space=vmem, size = 0x1000, scoped, tag = 'input window, operand 2, single buffered']
    #allocation9 [shape = 's32[1]{0}', space=sflag, size = 0x4, scoped, tag = 'scoped memory for tpu_custom_call.1']
    #allocation10 [shape = 'u8[4096]{0}', space=vmem, size = 0x1000, scoped, tag = 'input window, operand 3, single buffered']
    #allocation11 [shape = 'u8[4096]{0}', space=vmem, size = 0x1000, scoped, tag = 'input window, operand 4, single buffered']
    #allocation12 [shape = 's32[1]{0}', space=sflag, size = 0x4, scoped, tag = 'scoped memory for tpu_custom_call.1']
    #allocation13 [shape = 'u8[65536]{0}', space=vmem, size = 0x10000, scoped, tag = 'output window, operand 0']
    %11 = vsyncpa [#allocation6], 0
    %s12 = scalar_lea.sflag [#allocation6], 1
    %13 = vsyncpa %s12, 0
    %14 = vsyncpa [#allocation9], 0
    %15 = vsyncpa [#allocation12], 0
    %16 = vsyncpa [#allocation7], 0
    %s17 = scalar_lea.sflag [#allocation7], 1
    %18 = vsyncpa %s17, 0
    loop: start=0, step=1, limit=4
    $region2: #{tpu_custom_call.1} parent=1 // loop_pre_header
      _
    $region3: #{tpu_custom_call.1} parent=1 // loop_header
      %s20 = sphi 0, %s24
      %p21 = scmp.ge.s32.totalorder %s20, 4
      %s27 = sphi 0, %s39
      %s28 = sphi 0, %s35
      %s29 = sphi 0, %s27
      %s30 = sphi 0, %s28
      %s31 = sphi 0, %s29
      %s32 = sphi 0, %s30
      %s46 = sphi 0, %s48
      %s49 = sphi 0, %s46
      %s50 = sphi 0, %s49
      %s66 = sphi 0, %s50
      %s72 = sphi 0, %s74
      %s75 = sphi 0, %s72
      %s76 = sphi 0, %s75
      %s92 = sphi 0, %s76
      %s98 = sphi 0, %s100
      %s101 = sphi 0, %s98
      %s102 = sphi 0, %s101
      %s118 = sphi 0, %s102
      %s124 = sphi 0, %s126
      %s127 = sphi 0, %s124
      %s128 = sphi 0, %s127
      %s144 = sphi 0, %s128
      %s154 = sphi 0, %s156
      %s157 = sphi 0, %s154
      %s158 = sphi 0, %s157
      %s174 = sphi 0, %s158
    $region4: #{tpu_custom_call.1} parent=1 // loop_header_branch
      %23 = sbr.rel (%p21) target = $region8
    $region5: #{tpu_custom_call.1} parent=1 // loop_body
      %s25 = ssub.s32 %s20, 1
      %s26 = ssub.s32 %s20, 2
      %s33 = sadd.s32 1, %s28
      %p34 = scmp.ge.s32.totalorder %s33, 2
      %s35 = scalar_select %p34, 0, %s33
      %s36 = sadd.s32 1, %s27
      %s37 = scalar_select %p34, %s36, %s27
      %p38 = scmp.ge.s32.totalorder %s37, 1
      %s39 = scalar_select %p38, 0, %s37
      %s40 = ssub.s32 1, %s28
      %s41 = ssub.s32 1, %s35
      %s42 = ssub.s32 %s40, %s41
      %s43 = ssub.s32 %s27, %s39
      %s44 = sor.u32 %s42, %s43
      %p45 = scmp.eq.s32.totalorder %s44, 0
      %s47 = sadd.s32 %s46, 1
      %s48 = scalar_select %p45, %s46, %s47
      %p51 = pneg %p45
      %p52 = scmp.eq.s32.totalorder %s20, 1
      %p53 = por %p51, %p52
      %p54 = scmp.ne.s32.totalorder %s46, %s49
      %p55 = scmp.eq.s32.totalorder %s20, 0
      %p56 = por %p54, %p55
      %p57 = scmp.ne.s32.totalorder %s46, %s49
      %p58 = scmp.eq.s32.totalorder %s25, 1
      %p59 = por %p57, %p58
      %p60 = scmp.ne.s32.totalorder %s49, %s50
      %p61 = scmp.eq.s32.totalorder %s25, 0
      %p62 = por %p60, %p61
      %p63 = scmp.ne.s32.totalorder %s49, %s50
      %p64 = scmp.eq.s32.totalorder %s26, 1
      %p65 = por %p63, %p64
      %p67 = scmp.ne.s32.totalorder %s50, %s66
      %p68 = scmp.eq.s32.totalorder %s26, 0
      %p69 = por %p67, %p68
      %s70 = ssub.s32 %s27, %s39
      %p71 = scmp.eq.s32.totalorder %s70, 0
      %s73 = sadd.s32 %s72, 1
      %s74 = scalar_select %p71, %s72, %s73
      %p77 = pneg %p71
      %p78 = scmp.eq.s32.totalorder %s20, 1
      %p79 = por %p77, %p78
      %p80 = scmp.ne.s32.totalorder %s72, %s75
      %p81 = scmp.eq.s32.totalorder %s20, 0
      %p82 = por %p80, %p81
      %p83 = scmp.ne.s32.totalorder %s72, %s75
      %p84 = scmp.eq.s32.totalorder %s25, 1
      %p85 = por %p83, %p84
      %p86 = scmp.ne.s32.totalorder %s75, %s76
      %p87 = scmp.eq.s32.totalorder %s25, 0
      %p88 = por %p86, %p87
      %p89 = scmp.ne.s32.totalorder %s75, %s76
      %p90 = scmp.eq.s32.totalorder %s26, 1
      %p91 = por %p89, %p90
      %p93 = scmp.ne.s32.totalorder %s76, %s92
      %p94 = scmp.eq.s32.totalorder %s26, 0
      %p95 = por %p93, %p94
      %s96 = ssub.s32 %s27, %s39
      %p97 = scmp.eq.s32.totalorder %s96, 0
      %s99 = sadd.s32 %s98, 1
      %s100 = scalar_select %p97, %s98, %s99
      %p103 = pneg %p97
      %p104 = scmp.eq.s32.totalorder %s20, 1
      %p105 = por %p103, %p104
      %p106 = scmp.ne.s32.totalorder %s98, %s101
      %p107 = scmp.eq.s32.totalorder %s20, 0
      %p108 = por %p106, %p107
      %p109 = scmp.ne.s32.totalorder %s98, %s101
      %p110 = scmp.eq.s32.totalorder %s25, 1
      %p111 = por %p109, %p110
      %p112 = scmp.ne.s32.totalorder %s101, %s102
      %p113 = scmp.eq.s32.totalorder %s25, 0
      %p114 = por %p112, %p113
      %p115 = scmp.ne.s32.totalorder %s101, %s102
      %p116 = scmp.eq.s32.totalorder %s26, 1
      %p117 = por %p115, %p116
      %p119 = scmp.ne.s32.totalorder %s102, %s118
      %p120 = scmp.eq.s32.totalorder %s26, 0
      %p121 = por %p119, %p120
      %s122 = ssub.s32 %s27, %s39
      %p123 = scmp.eq.s32.totalorder %s122, 0
      %s125 = sadd.s32 %s124, 1
      %s126 = scalar_select %p123, %s124, %s125
      %p129 = pneg %p123
      %p130 = scmp.eq.s32.totalorder %s20, 1
      %p131 = por %p129, %p130
      %p132 = scmp.ne.s32.totalorder %s124, %s127
      %p133 = scmp.eq.s32.totalorder %s20, 0
      %p134 = por %p132, %p133
      %p135 = scmp.ne.s32.totalorder %s124, %s127
      %p136 = scmp.eq.s32.totalorder %s25, 1
      %p137 = por %p135, %p136
      %p138 = scmp.ne.s32.totalorder %s127, %s128
      %p139 = scmp.eq.s32.totalorder %s25, 0
      %p140 = por %p138, %p139
      %p141 = scmp.ne.s32.totalorder %s127, %s128
      %p142 = scmp.eq.s32.totalorder %s26, 1
      %p143 = por %p141, %p142
      %p145 = scmp.ne.s32.totalorder %s128, %s144
      %p146 = scmp.eq.s32.totalorder %s26, 0
      %p147 = por %p145, %p146
      %s148 = ssub.s32 1, %s28
      %s149 = ssub.s32 1, %s35
      %s150 = ssub.s32 %s148, %s149
      %s151 = ssub.s32 %s27, %s39
      %s152 = sor.u32 %s150, %s151
      %p153 = scmp.eq.s32.totalorder %s152, 0
      %s155 = sadd.s32 %s154, 1
      %s156 = scalar_select %p153, %s154, %s155
      %p159 = pneg %p153
      %p160 = scmp.eq.s32.totalorder %s20, 1
      %p161 = por %p159, %p160
      %p162 = scmp.ne.s32.totalorder %s154, %s157
      %p163 = scmp.eq.s32.totalorder %s20, 0
      %p164 = por %p162, %p163
      %p165 = scmp.ne.s32.totalorder %s154, %s157
      %p166 = scmp.eq.s32.totalorder %s25, 1
      %p167 = por %p165, %p166
      %p168 = scmp.ne.s32.totalorder %s157, %s158
      %p169 = scmp.eq.s32.totalorder %s25, 0
      %p170 = por %p168, %p169
      %p171 = scmp.ne.s32.totalorder %s157, %s158
      %p172 = scmp.eq.s32.totalorder %s26, 1
      %p173 = por %p171, %p172
      %p175 = scmp.ne.s32.totalorder %s158, %s174
      %p176 = scmp.eq.s32.totalorder %s26, 0
      %p177 = por %p175, %p176
      %p178 = scmp.le.s32.totalorder 1, %s20
      %p179 = scmp.lt.s32.totalorder %s20, 3
      %p180 = pnand %p178, %p179
      %p181 = pneg %p180
      // Predicated region
      $region9: #{tpu_custom_call.1} parent=5 // pred_check
        _
      $region10: #{tpu_custom_call.1} parent=5 // pred_check_branch
        %183 = sbr.rel (%p180) target = $region12
      $region11: #{tpu_custom_call.1} parent=5 // pred_region
        %s184 = ssub.s32 %s20, 1
        // Predicated region
        $region13: #{tpu_custom_call.1} parent=11 // pred_check
          %p185 = pneg %p88
        $region14: #{tpu_custom_call.1} parent=11 // pred_check_branch
          %187 = sbr.rel (%p185) target = $region16
        $region15: #{tpu_custom_call.1} parent=11 // pred_region
          %s189 = ssub.s32 128, 128
          %190 = vsyncadd [#allocation9], %s189
          %s191 = smul.addr %s29, 128
          %s192 = scalar_lea.hbm %s2, %s191
          %s194 = sshll.u32 [#allocation8], 4
          %s195 = int_to_ptr.vmem [resolvable:$true] %s194
          %197 = dma.hbm_to_vmem [thread:$0]  %s192, 128, %s195, [#allocation9]
        $region16: #{tpu_custom_call.1} parent=11 // pred_fallthru
          _
        // Predicated region
        $region17: #{tpu_custom_call.1} parent=11 // pred_check
          %p198 = pneg %p114
        $region18: #{tpu_custom_call.1} parent=11 // pred_check_branch
          %200 = sbr.rel (%p198) target = $region20
        $region19: #{tpu_custom_call.1} parent=11 // pred_region
          %s202 = ssub.s32 128, 128
          %203 = vsyncadd [#allocation9], %s202
          %s204 = smul.addr %s29, 128
          %s205 = scalar_lea.hbm %s3, %s204
          %s207 = sshll.u32 [#allocation10], 4
          %s208 = int_to_ptr.vmem [resolvable:$true] %s207
          %210 = dma.hbm_to_vmem [thread:$0]  %s205, 128, %s208, [#allocation9]
        $region20: #{tpu_custom_call.1} parent=11 // pred_fallthru
          _
        // Predicated region
        $region21: #{tpu_custom_call.1} parent=11 // pred_check
          %p211 = pneg %p140
        $region22: #{tpu_custom_call.1} parent=11 // pred_check_branch
          %213 = sbr.rel (%p211) target = $region24
        $region23: #{tpu_custom_call.1} parent=11 // pred_region
          %s215 = ssub.s32 128, 128
          %216 = vsyncadd [#allocation12], %s215
          %s217 = smul.addr %s29, 128
          %s218 = scalar_lea.hbm %s4, %s217
          %s220 = sshll.u32 [#allocation11], 4
          %s221 = int_to_ptr.vmem [resolvable:$true] %s220
          %223 = dma.hbm_to_vmem [thread:$0]  %s218, 128, %s221, [#allocation12]
        $region24: #{tpu_custom_call.1} parent=11 // pred_fallthru
          _
      $region12: #{tpu_custom_call.1} parent=5 // pred_fallthru
        _
      %p224 = scmp.lt.s32.totalorder %s20, 2
      // Predicated region
      $region25: #{tpu_custom_call.1} parent=5 // pred_check
        %p225 = pneg %p224
      $region26: #{tpu_custom_call.1} parent=5 // pred_check_branch
        %227 = sbr.rel (%p225) target = $region28
      $region27: #{tpu_custom_call.1} parent=5 // pred_region
        // Predicated region
        $region29: #{tpu_custom_call.1} parent=27 // pred_check
          %p228 = pneg %p56
        $region30: #{tpu_custom_call.1} parent=27 // pred_check_branch
          %230 = sbr.rel (%p228) target = $region32
        $region31: #{tpu_custom_call.1} parent=27 // pred_region
          %s231 = sand.u32 %s46, 1
          %s232 = scalar_lea.sflag [#allocation6], %s231
          %s233 = sand.u32 %s46, 1
          %s234 = smul.addr %s233, 64
          %s235 = scalar_lea.vmem [#allocation5], %s234
          %s236 = ssub.s32 1, %s28
          %s237 = smul.u32 8, %s236
          %s239 = ssub.s32 1024, 1024
          %240 = vsyncadd %s232, %s239
          %s241 = sadd.s32 %s27, %s237
          %s242 = smul.addr %s241, 128
          %s243 = scalar_lea.hbm %s1, %s242
          %s244 = sshll.u32 %s235, 4
          %s245 = int_to_ptr.vmem [resolvable:$true] %s244
          %250 = dma.hbm_to_vmem [thread:$0]  %s243, 1024, %s245, %s232, 128, 128, 8
        $region32: #{tpu_custom_call.1} parent=27 // pred_fallthru
          _
      $region28: #{tpu_custom_call.1} parent=5 // pred_fallthru
        _
      %p251 = scmp.le.s32.totalorder 1, %s20
      %p252 = scmp.lt.s32.totalorder %s20, 3
      %p253 = pnand %p251, %p252
      %p254 = pneg %p253
      // Predicated region
      $region33: #{tpu_custom_call.1} parent=5 // pred_check
        _
      $region34: #{tpu_custom_call.1} parent=5 // pred_check_branch
        %256 = sbr.rel (%p253) target = $region36
      $region35: #{tpu_custom_call.1} parent=5 // pred_region
        %s257 = ssub.s32 %s20, 1
        %s258 = sand.u32 %s49, 1
        %s259 = scalar_lea.sflag [#allocation6], %s258
        %s260 = sand.u32 %s49, 1
        %s261 = smul.addr %s260, 64
        %s262 = scalar_lea.vmem [#allocation5], %s261
        // Predicated region
        $region37: #{tpu_custom_call.1} parent=35 // pred_check
          %p263 = pneg %p62
        $region38: #{tpu_custom_call.1} parent=35 // pred_check_branch
          %265 = sbr.rel (%p263) target = $region40
        $region39: #{tpu_custom_call.1} parent=35 // pred_region
          %266 = dma.done %s259, 1024
        $region40: #{tpu_custom_call.1} parent=35 // pred_fallthru
          _
        // Predicated region
        $region41: #{tpu_custom_call.1} parent=35 // pred_check
          %p267 = pneg %p88
        $region42: #{tpu_custom_call.1} parent=35 // pred_check_branch
          %269 = sbr.rel (%p267) target = $region44
        $region43: #{tpu_custom_call.1} parent=35 // pred_region
          %270 = dma.done [#allocation9], 128
        $region44: #{tpu_custom_call.1} parent=35 // pred_fallthru
          _
        // Predicated region
        $region45: #{tpu_custom_call.1} parent=35 // pred_check
          %p271 = pneg %p114
        $region46: #{tpu_custom_call.1} parent=35 // pred_check_branch
          %273 = sbr.rel (%p271) target = $region48
        $region47: #{tpu_custom_call.1} parent=35 // pred_region
          %274 = dma.done [#allocation9], 128
        $region48: #{tpu_custom_call.1} parent=35 // pred_fallthru
          _
        // Predicated region
        $region49: #{tpu_custom_call.1} parent=35 // pred_check
          %p275 = pneg %p140
        $region50: #{tpu_custom_call.1} parent=35 // pred_check_branch
          %277 = sbr.rel (%p275) target = $region52
        $region51: #{tpu_custom_call.1} parent=35 // pred_region
          %278 = dma.done [#allocation12], 128
        $region52: #{tpu_custom_call.1} parent=35 // pred_fallthru
          _
        %s279 = sand.u32 %s49, 1
        %s280 = scalar_lea.sflag [#allocation6], %s279
        %s281 = sand.u32 %s49, 1
        %s282 = smul.addr %s281, 64
        %s283 = scalar_lea.vmem [#allocation5], %s282
        %p284 = pneg %p62
        %p285 = pneg %p59
        %p286 = pneg %p88
        %p287 = pneg %p85
        %p288 = pneg %p114
        %p289 = pneg %p111
        %p290 = pneg %p140
        %p291 = pneg %p137
        %p292 = pneg %p170
        %p293 = pneg %p167
        %s294 = sand.u32 %s157, 1
        %s295 = scalar_lea.sflag [#allocation7], %s294
        %s296 = sand.u32 %s157, 1
        %s297 = smul.addr %s296, 64
        %s298 = scalar_lea.vmem [#allocation13], %s297
        %s299 = ssub.s32 1, %s30
        %s300 = smul.u32 8, %s299
        %s301 = ssub.s32 1, %s30
        %s302 = smul.u32 8, %s301
        %s303 = sld [smem:[#allocation4 + %s29]]
        %s304 = ssub.s32 1, %s30
        %s305 = smul.u32 %s304, 8
        %p306 = scmp.eq.s32.totalorder %s30, 0
        // Predicated region
        $region53: #{tpu_custom_call.1} parent=35 // pred_check
          %p307 = pneg %p306
        $region54: #{tpu_custom_call.1} parent=35 // pred_check_branch
          %309 = sbr.rel (%p307) target = $region56
        $region55: #{tpu_custom_call.1} parent=35 // pred_region
          %310 = vst [vmem:[#allocation2] sm:$0xff] -inf
        $region56: #{tpu_custom_call.1} parent=35 // pred_fallthru
          _
        %p311 = scmp.lt.s32.totalorder %s305, %s303
        // Predicated region
        $region57: #{tpu_custom_call.1} parent=35 // pred_check
          %p312 = pneg %p311
        $region58: #{tpu_custom_call.1} parent=35 // pred_check_branch
          %314 = sbr.rel (%p312) target = $region60
        $region59: #{tpu_custom_call.1} parent=35 // pred_region
          %s315 = ssub.s32 %s303, %s305
          %p316 = scmp.lt.s32.totalorder %s315, 8
          %s317 = scalar_select %p316, %s315, 8
          %v318 = vld [vmem:[#allocation8] sm:$0xff]
          %v319 = vld [vmem:[#allocation10] sm:$0xff]
          %v320 = vld [vmem:[#allocation11] sm:$0xff]
          %v321 = vlaneseq
          %v322 = vand.u32 %v321, 127
          %vm323 = vcmp.eq.s32.totalorder %v322, 127
          %v324 = vsel %vm323, -inf, 0.0
          %v325 = vld [vmem:[#allocation2] sm:$0xff]
          // While loop
          $region61: #{tpu_custom_call.1} parent=59 // loop_pre_header
            _
          $region62: #{tpu_custom_call.1} parent=59 // loop_header
            %s327 = sphi 0, %s329
            %p328 = scmp.ge.s32.totalorder %s327, %s317
            %v332 = vphi %v325, %v391
          $region63: #{tpu_custom_call.1} parent=59 // loop_header_branch
            %331 = sbr.rel (%p328) target = $region67
          $region64: #{tpu_custom_call.1} parent=59 // loop_body
            %s333 = ssub.s32 %s317, 1
            %s334 = ssub.s32 %s333, %s327
            %335 = vrot.lane.b32.xlu0 %v332, 127
            %v336 = vpop.permute.xlu0 %335
            %v337 = vadd.f32 %v336, %v324
            %338 = vrot.lane.b32.xlu0 %v332, 126
            %v339 = vpop.permute.xlu0 %338
            %v340 = vadd.f32 %v339, %v319
            %v341 = vmax.f32 %v332, %v337
            %v342 = vmax.f32 %v341, %v340
            %v343 = vmin.f32 %v332, %v337
            %vm344 = vcmp.ge.f32.partialorder %v340, %v341
            %v345 = vsel %vm344, %v341, %v340
            %vm346 = vcmp.eq.f32.partialorder %v342, -inf
            %v347 = vsel %vm346, 0.0, %v342
            %v348 = vsub.f32 %v343, %v347
            %v349 = vmul.f32 %v348, 1.442695
            %v350 = vpow.pop %v349
            %v351 = vsub.f32 %v345, %v347
            %v352 = vmul.f32 %v351, 1.442695
            %v353 = vpow.pop %v352
            %v354 = vadd.f32 %v350, %v353
            %v355 = vadd.f32 %v354, 1.0
            %v356 = vlog2.pop %v355
            %v357 = vmul.f32 %v356, 0.6931472
            %v358 = vadd.f32 %v347, %v357
            %v359 = vsel %vm346, -inf, %v358
            %s360 = sadd.s32 %s305, %s334
            %v361 = vstv %s360
            %vm362 = vcmp.eq.s32.totalorder %v361, %v320
            %v363 = vsel %vm362, %v318, %v359
            %vm364 = vcmp.eq.f32.partialorder %v363, -inf
            %vm365 = vcmp.eq.f32.partialorder %v332, -inf
            %vm366 = vmxor %vm364, 1
            %vm367 = vmxor %vm365, 1
            %vm368 = vmand %vm366, %vm367
            %v369 = vsel %vm368, %v363, -1.0
            %v370 = vsel %vm368, %v332, -2.0
            %v371 = vsub.f32 %v370, %v369
            %v372 = vmul.f32 %v371, 1.442695
            %v373 = vpow.pop %v372
            %v374 = vsub.f32 1.0, %v373
            %v375 = vlog2.pop %v374
            %v376 = vmul.f32 %v375, 0.6931472
            %v377 = vadd.f32 %v369, %v376
            %v378 = vand.u32 2147483647, %v377
            %vm379 = vcmp.eq.f32.partialorder %v378, inf
            %vm380 = vcmp.ne.f32.partialorder %v377, %v377
            %vm381 = vmor %vm379, %vm380
            %v382 = vsel %vm381, -2000.4586, %v377
            %v383 = vsel %vm368, %v382, -inf
            %vm384 = vmand %vm366, %vm365
            %v385 = vsel %vm384, %v363, %v383
            %s386 = smul.u32 %s334, 8
            %s387 = scalar_lea.vmem %s298, %s386 [#allocation13]
            %388 = vst [vmem:[%s387] sm:$0xff] %v385
            %s389 = scalar_lea.vmem %s262, %s386 [#allocation5]
            %v390 = vld [vmem:[%s389] sm:$0xff]
            %v391 = vadd.f32 %v363, %v390
          $region65: #{tpu_custom_call.1} parent=59 // loop_footer
            %s329 = sadd.s32 %s327, 1
          $region66: #{tpu_custom_call.1} parent=59 // loop_footer_branch
            %326 = sbr.rel target = $region62
          $region67: #{tpu_custom_call.1} parent=59 // loop_exit
            _
          %392 = vst [vmem:[#allocation2] sm:$0xff] %v332
        $region60: #{tpu_custom_call.1} parent=35 // pred_fallthru
          _
        %s393 = sand.u32 %s157, 1
        %s394 = scalar_lea.sflag [#allocation7], %s393
        %s395 = sand.u32 %s157, 1
        %s396 = smul.addr %s395, 64
        %s397 = scalar_lea.vmem [#allocation13], %s396
        // Predicated region
        $region68: #{tpu_custom_call.1} parent=35 // pred_check
          %p398 = pneg %p167
        $region69: #{tpu_custom_call.1} parent=35 // pred_check_branch
          %400 = sbr.rel (%p398) target = $region71
        $region70: #{tpu_custom_call.1} parent=35 // pred_region
          %s401 = ssub.s32 1, %s30
          %s402 = smul.u32 8, %s401
          %s404 = ssub.s32 1024, 1024
          %405 = vsyncadd %s394, %s404
          %s406 = sadd.s32 %s29, %s402
          %s407 = smul.addr %s406, 128
          %s408 = scalar_lea.hbm %s5, %s407
          %s409 = sshll.u32 %s397, 4
          %s410 = int_to_ptr.vmem [resolvable:$true] %s409
          %415 = dma.vmem_to_hbm [thread:$0]  %s410, 1024, %s408, %s394, 128, 128, 8
        $region71: #{tpu_custom_call.1} parent=35 // pred_fallthru
          _
      $region36: #{tpu_custom_call.1} parent=5 // pred_fallthru
        _
      %p416 = scmp.le.s32.totalorder 2, %s20
      // Predicated region
      $region72: #{tpu_custom_call.1} parent=5 // pred_check
        %p417 = pneg %p416
      $region73: #{tpu_custom_call.1} parent=5 // pred_check_branch
        %419 = sbr.rel (%p417) target = $region75
      $region74: #{tpu_custom_call.1} parent=5 // pred_region
        %s420 = ssub.s32 %s20, 2
        // Predicated region
        $region76: #{tpu_custom_call.1} parent=74 // pred_check
          %p421 = pneg %p173
        $region77: #{tpu_custom_call.1} parent=74 // pred_check_branch
          %423 = sbr.rel (%p421) target = $region79
        $region78: #{tpu_custom_call.1} parent=74 // pred_region
          %s424 = sand.u32 %s158, 1
          %s425 = scalar_lea.sflag [#allocation7], %s424
          %s426 = sand.u32 %s158, 1
          %s427 = smul.addr %s426, 64
          %s428 = scalar_lea.vmem [#allocation13], %s427
          %429 = dma.done %s425, 1024
        $region79: #{tpu_custom_call.1} parent=74 // pred_fallthru
          _
      $region75: #{tpu_custom_call.1} parent=5 // pred_fallthru
        _
    $region6: #{tpu_custom_call.1} parent=1 // loop_footer
      %s24 = sadd.s32 1, %s20
    $region7: #{tpu_custom_call.1} parent=1 // loop_footer_branch
      %19 = sbr.rel target = $region3
    $region8: #{tpu_custom_call.1} parent=1 // loop_exit
      _
    %430 = vsyncpa [#allocation6], 1
    %s431 = scalar_lea.sflag [#allocation6], 1
    %432 = vsyncpa %s431, 1
    %433 = vsyncpa [#allocation9], 1
    %434 = vsyncpa [#allocation12], 1
    %435 = vsyncpa [#allocation7], 1
    %s436 = scalar_lea.sflag [#allocation7], 1
    %437 = vsyncpa %s436, 1

</llo_original>
